<compile_context>
chip_gen: v5e
topology: v5e:2x2
jax: 0.10.0
libtpu: 0.0.40
codegen_flags: <defaults>
</compile_context>

<pallas_src>
import jax
import jax.numpy as jnp
from jax.experimental import pallas as pl
from jax.experimental.pallas import tpu as pltpu


def conv_head_kernel(x_ref, w_ref, b_ref, o_ref):
    # x_ref: (1, C, TW)   w_ref: (C, Kp)   b_ref: (1, Kp)   o_ref: (1, TW, Kp)
    x_cw = x_ref[0]                                        # (C, TW), native layout
    # Contract the channel dim of both operands: (C,TW)^T @ (C,Kp) -> (TW,Kp).
    acc = jax.lax.dot_general(
        x_cw, w_ref[...],
        dimension_numbers=(((0,), (0,)), ((), ())),
        preferred_element_type=jnp.float32)                # MXU, f32 accumulate
    # H == 1, so .mean(2) over the H axis is a no-op (divide by 1).
    o_ref[0] = (acc + b_ref[...]).astype(o_ref.dtype)      # bias add in f32


def conv_head_forward(x_nchw, weight, bias, *, tile_w=512, compute_dtype=None):
    """ConvHead forward (num_convs=0 path).

    x_nchw: (N, C, 1, W); weight: (K, C) torch Conv2d 1x1 layout; bias: (K,).
    Returns (N, W, K) = conv1x1(x).mean(2).permute(0, 2, 1).
    compute_dtype: optionally jnp.bfloat16 for x/weight on v6e/v7x
    (accumulation stays f32).
    """
    N, C, H, W = x_nchw.shape
    assert H == 1, "ConvHead requires H == 1"
    K = weight.shape[0]
    out_dtype = x_nchw.dtype

    # Squeeze H only -- keeps x in native (N, C, W) layout, no HBM transpose.
    x = x_nchw.reshape(N, C, W)

    # Pad K up to a lane-dense multiple of 128 (unmasked output stores).
    k_pad = max(128, pl.cdiv(K, 128) * 128)
    w = jnp.zeros((C, k_pad), weight.dtype).at[:, :K].set(weight.T)
    b = jnp.zeros((1, k_pad), jnp.float32).at[0, :K].set(bias.astype(jnp.float32))

    # Tile the W axis: either the whole (small) W, or a large 128-aligned tile.
    # Pad W so the grid divides evenly (extra rows are sliced off afterwards).
    if W <= tile_w:
        tw = W
        w_pad = W
    else:
        tw = tile_w                       # multiple of 128 by construction
        w_pad = pl.cdiv(W, tw) * tw
    if w_pad != W:
        x = jnp.pad(x, ((0, 0), (0, 0), (0, w_pad - W)))

    if compute_dtype is not None:
        x = x.astype(compute_dtype)
        w = w.astype(compute_dtype)

    # VMEM footprint per step (double-buffered x/out blocks + resident w,b):
    #   ~2*(C*tw + tw*k_pad)*bytes + C*k_pad*bytes -- well under the 32 MiB
    # scoped default even on v7x for tw=512 and realistic C.
    out = pl.pallas_call(
        conv_head_kernel,
        out_shape=jax.ShapeDtypeStruct((N, w_pad, k_pad), out_dtype),
        grid_spec=pltpu.PrefetchScalarGridSpec(
            num_scalar_prefetch=0,
            grid=(N, w_pad // tw),
            in_specs=[
                pl.BlockSpec((1, C, tw), lambda n, wi: (n, 0, wi)),
                pl.BlockSpec((C, k_pad), lambda n, wi: (0, 0)),   # VMEM-resident
                pl.BlockSpec((1, k_pad), lambda n, wi: (0, 0)),   # VMEM-resident
            ],
            out_specs=pl.BlockSpec((1, tw, k_pad), lambda n, wi: (n, wi, 0)),
        ),
        compiler_params=pltpu.CompilerParams(
            dimension_semantics=("parallel", "parallel")),
    )(x, w, b)

    # Drop the W / K padding outside the kernel.
    if w_pad != W or k_pad != K:
        out = out[:, :W, :K]
    return out


def reference_forward(x_nchw, weight, bias):
    # Pure-JAX reference of the PyTorch forward.
    # conv1x1: out[n,k,0,w] = sum_c x[n,c,0,w]*weight[k,c] + bias[k]
    conv = jnp.einsum("nchw,kc->nkhw", x_nchw, weight) + bias[None, :, None, None]
    out = conv.mean(axis=2)                 # (N, K, W)
    return jnp.transpose(out, (0, 2, 1))    # (N, W, K)


if __name__ == "__main__":
    # Small, deterministic setup: batch=2, in_channels=4, H=1, W=16, num_class=7.
    # TODO(synk): num_convs > 0 path (ConvModules stack) not instantiated; the
    # default ConvHead config uses num_convs=0 (single 1x1 Conv2d).
    N, C, H, W, K = 2, 4, 1, 16, 7
    key = jax.random.PRNGKey(0)
    kx, kw, kb = jax.random.split(key, 3)

    x = jax.random.normal(kx, (N, C, H, W), dtype=jnp.float32)
    # Deterministic "init_weights"-style params (kaiming-ish scale for 1x1 conv).
    weight = jax.random.normal(kw, (K, C), dtype=jnp.float32) * (2.0 / C) ** 0.5
    bias = jax.random.normal(kb, (K,), dtype=jnp.float32) * 0.01

    # f32 here for a tight correctness check; pass compute_dtype=jnp.bfloat16
    # on v6e/v7x to halve HBM traffic on large shapes.
    out = conv_head_forward(x, weight, bias)
    out = jax.block_until_ready(out)

    ref = reference_forward(x, weight, bias)
    assert out.shape == (N, W, K)
    assert jnp.allclose(out, ref, atol=1e-5, rtol=1e-5)

    print("KERNEL_OK")
</pallas_src>

<mosaic_0001>
module attributes {stable_mosaic.version = 11 : i64} {
  func.func @conv_head_kernel(%arg0: i32, %arg1: i32, %arg2: memref<1x4x16xf32, #tpu.memory_space<vmem>>, %arg3: memref<4x128xf32, #tpu.memory_space<vmem>>, %arg4: memref<1x128xf32, #tpu.memory_space<vmem>>, %arg5: memref<1x16x128xf32, #tpu.memory_space<vmem>>) attributes {dimension_semantics = [#tpu.dimension_semantics<parallel>, #tpu.dimension_semantics<parallel>], iteration_bounds = array<i64: 2, 1>, scalar_prefetch = 0 : i64, scratch_operands = 0 : i64, tpu.core_type = #tpu.core_type<tc>, window_params = [{transform_indices = @transform_0, window_bounds = array<i64: 1, 4, 16>}, {pipeline_mode = #tpu.pipeline_mode<synchronous>, transform_indices = @transform_1, window_bounds = array<i64: 4, 128>}, {pipeline_mode = #tpu.pipeline_mode<synchronous>, transform_indices = @transform_2, window_bounds = array<i64: 1, 128>}, {transform_indices = @transform_3, window_bounds = array<i64: 1, 16, 128>}]} {
    %c0 = arith.constant 0 : index
    %c0_0 = arith.constant 0 : index
    %c0_1 = arith.constant 0 : index
    %0 = vector.load %arg2[%c0, %c0_0, %c0_1] : memref<1x4x16xf32, #tpu.memory_space<vmem>>, vector<1x4x16xf32>
    %1 = vector.shape_cast %0 : vector<1x4x16xf32> to vector<4x16xf32>
    %c0_2 = arith.constant 0 : index
    %c0_3 = arith.constant 0 : index
    %2 = vector.load %arg3[%c0_2, %c0_3] : memref<4x128xf32, #tpu.memory_space<vmem>>, vector<4x128xf32>
    %cst = arith.constant dense<0.000000e+00> : vector<16x128xf32>
    %3 = tpu.matmul %1, %2, %cst {dimension_numbers = #tpu.dot_dimension_numbers<[0], [0], [1], [1], [0, 1, 1, 1], [], []>} : vector<4x16xf32>, vector<4x128xf32>, vector<16x128xf32> -> vector<16x128xf32>
    %c0_4 = arith.constant 0 : index
    %c0_5 = arith.constant 0 : index
    %4 = vector.load %arg4[%c0_4, %c0_5] : memref<1x128xf32, #tpu.memory_space<vmem>>, vector<1x128xf32>
    %5 = vector.broadcast %4 : vector<1x128xf32> to vector<16x128xf32>
    %6 = arith.addf %3, %5 : vector<16x128xf32>
    %c0_6 = arith.constant 0 : index
    %c0_7 = arith.constant 0 : index
    %c0_8 = arith.constant 0 : index
    %7 = vector.load %arg5[%c0_6, %c0_7, %c0_8] : memref<1x16x128xf32, #tpu.memory_space<vmem>>, vector<1x16x128xf32>
    %8 = vector.shape_cast %7 : vector<1x16x128xf32> to vector<16x128xf32>
    %9 = vector.shape_cast %6 : vector<16x128xf32> to vector<1x16x128xf32>
    tpu.vector_store %arg5[%c0_6, %c0_7, %c0_8], %9 {strides = array<i32>} : memref<1x16x128xf32, #tpu.memory_space<vmem>>, vector<1x16x128xf32>,
    return
  }
  func.func @transform_0(%arg0: i32, %arg1: i32) -> (i32, i32, i32) {
    %c0_i32 = arith.constant 0 : i32
    %c0_i32_0 = arith.constant 0 : i32
    return %arg0, %c0_i32, %arg1 : i32, i32, i32
  }
  func.func @transform_1(%arg0: i32, %arg1: i32) -> (i32, i32) {
    %c0_i32 = arith.constant 0 : i32
    %c0_i32_0 = arith.constant 0 : i32
    %c0_i32_1 = arith.constant 0 : i32
    return %c0_i32, %c0_i32_0 : i32, i32
  }
  func.func @transform_2(%arg0: i32, %arg1: i32) -> (i32, i32) {
    %c0_i32 = arith.constant 0 : i32
    %c0_i32_0 = arith.constant 0 : i32
    %c0_i32_1 = arith.constant 0 : i32
    return %c0_i32, %c0_i32_0 : i32, i32
  }
  func.func @transform_3(%arg0: i32, %arg1: i32) -> (i32, i32, i32) {
    %c0_i32 = arith.constant 0 : i32
    %c0_i32_0 = arith.constant 0 : i32
    return %arg0, %arg1, %c0_i32 : i32, i32, i32
  }
}

</mosaic_0001>

<llo_original>
// kernel: tpu_custom_call.1
$region0: #{tpu_custom_call.1}
  #allocation0 [shape = 'u32[]', space=smem, size = 0x4, offset = 0x4, fixed_abs, tag = 'smem constant byte address 0x4 - core index']
  #allocation1 [shape = 'u32[72,128]{1,0:T(1,128)}', space=vmem, size = 0x9000, scoped, tag = 'internal scratch']
  %s0 = inlined_call_operand.hbm [shape: f32[2,4,16], index: 0, kind: input, shape index: {}]
  %s1 = inlined_call_operand.hbm [shape: f32[4,128], index: 1, kind: input, shape index: {}]
  %s2 = inlined_call_operand.vmem [shape: f32[1,128], index: 2, kind: input, shape index: {}]
  %s3 = inlined_call_operand.hbm [shape: f32[2,16,128], index: 3, kind: output, shape index: {}]
  %s4 = sld [smem:[#allocation0]]
  $region53: #{tpu_custom_call.1} parent=0
    _
  %s6 = ssub.s32 1, %s4
  %s7 = scalar_select 0, %s6, %s4
  $region1: #{tpu_custom_call.1} parent=0
    #allocation2 [shape = 'u8[4096]{0}', space=vmem, size = 0x1000, scoped, tag = 'input window, operand 0']
    #allocation3 [shape = 's32[2]{0}', space=sflag, size = 0x8, scoped, tag = 'scoped memory for tpu_custom_call.1']
    #allocation4 [shape = 's32[2]{0}', space=sflag, size = 0x8, scoped, tag = 'scoped memory for tpu_custom_call.1']
    #allocation5 [shape = 'u8[2048]{0}', space=vmem, size = 0x800, scoped, tag = 'input window, operand 1, single buffered']
    #allocation6 [shape = 's32[1]{0}', space=sflag, size = 0x4, scoped, tag = 'scoped memory for tpu_custom_call.1']
    #allocation7 [shape = 'u8[16384]{0}', space=vmem, size = 0x4000, scoped, tag = 'output window, operand 0']
    %8 = vsyncpa [#allocation3], 0
    %s9 = scalar_lea.sflag [#allocation3], 1
    %10 = vsyncpa %s9, 0
    %11 = vsyncpa [#allocation6], 0
    %12 = vsyncpa [#allocation4], 0
    %s13 = scalar_lea.sflag [#allocation4], 1
    %14 = vsyncpa %s13, 0
    loop: start=0, step=1, limit=4
    $region2: #{tpu_custom_call.1} parent=1 // loop_pre_header
      _
    $region3: #{tpu_custom_call.1} parent=1 // loop_header
      %s16 = sphi 0, %s20
      %p17 = scmp.ge.s32.totalorder %s16, 4
      %s23 = sphi 0, %s35
      %s24 = sphi 0, %s31
      %s25 = sphi 0, %s23
      %s26 = sphi 0, %s24
      %s27 = sphi 0, %s25
      %s28 = sphi 0, %s26
      %s40 = sphi 0, %s42
      %s43 = sphi 0, %s40
      %s44 = sphi 0, %s43
      %s60 = sphi 0, %s44
      %s64 = sphi 0, %s64
      %s66 = sphi 0, %s64
      %s67 = sphi 0, %s66
      %s81 = sphi 0, %s67
      %s85 = sphi 0, %s85
      %s87 = sphi 0, %s85
      %s88 = sphi 0, %s87
      %s102 = sphi 0, %s88
      %s110 = sphi 0, %s112
      %s113 = sphi 0, %s110
      %s114 = sphi 0, %s113
      %s130 = sphi 0, %s114
    $region4: #{tpu_custom_call.1} parent=1 // loop_header_branch
      %19 = sbr.rel (%p17) target = $region8
    $region5: #{tpu_custom_call.1} parent=1 // loop_body
      %s21 = ssub.s32 %s16, 1
      %s22 = ssub.s32 %s16, 2
      %s29 = sadd.s32 1, %s24
      %p30 = scmp.ge.s32.totalorder %s29, 1
      %s31 = scalar_select %p30, 0, %s29
      %s32 = sadd.s32 1, %s23
      %s33 = scalar_select %p30, %s32, %s23
      %p34 = scmp.ge.s32.totalorder %s33, 2
      %s35 = scalar_select %p34, 0, %s33
      %s36 = ssub.s32 %s23, %s35
      %s37 = ssub.s32 %s24, %s31
      %s38 = sor.u32 %s36, %s37
      %p39 = scmp.eq.s32.totalorder %s38, 0
      %s41 = sadd.s32 %s40, 1
      %s42 = scalar_select %p39, %s40, %s41
      %p45 = pneg %p39
      %p46 = scmp.eq.s32.totalorder %s16, 1
      %p47 = por %p45, %p46
      %p48 = scmp.ne.s32.totalorder %s40, %s43
      %p49 = scmp.eq.s32.totalorder %s16, 0
      %p50 = por %p48, %p49
      %p51 = scmp.ne.s32.totalorder %s40, %s43
      %p52 = scmp.eq.s32.totalorder %s21, 1
      %p53 = por %p51, %p52
      %p54 = scmp.ne.s32.totalorder %s43, %s44
      %p55 = scmp.eq.s32.totalorder %s21, 0
      %p56 = por %p54, %p55
      %p57 = scmp.ne.s32.totalorder %s43, %s44
      %p58 = scmp.eq.s32.totalorder %s22, 1
      %p59 = por %p57, %p58
      %p61 = scmp.ne.s32.totalorder %s44, %s60
      %p62 = scmp.eq.s32.totalorder %s22, 0
      %p63 = por %p61, %p62
      %s65 = sadd.s32 %s64, 1
      %p68 = scmp.eq.s32.totalorder %s16, 1
      %p69 = scmp.ne.s32.totalorder %s64, %s66
      %p70 = scmp.eq.s32.totalorder %s16, 0
      %p71 = por %p69, %p70
      %p72 = scmp.ne.s32.totalorder %s64, %s66
      %p73 = scmp.eq.s32.totalorder %s21, 1
      %p74 = por %p72, %p73
      %p75 = scmp.ne.s32.totalorder %s66, %s67
      %p76 = scmp.eq.s32.totalorder %s21, 0
      %p77 = por %p75, %p76
      %p78 = scmp.ne.s32.totalorder %s66, %s67
      %p79 = scmp.eq.s32.totalorder %s22, 1
      %p80 = por %p78, %p79
      %p82 = scmp.ne.s32.totalorder %s67, %s81
      %p83 = scmp.eq.s32.totalorder %s22, 0
      %p84 = por %p82, %p83
      %s86 = sadd.s32 %s85, 1
      %p89 = scmp.eq.s32.totalorder %s16, 1
      %p90 = scmp.ne.s32.totalorder %s85, %s87
      %p91 = scmp.eq.s32.totalorder %s16, 0
      %p92 = por %p90, %p91
      %p93 = scmp.ne.s32.totalorder %s85, %s87
      %p94 = scmp.eq.s32.totalorder %s21, 1
      %p95 = por %p93, %p94
      %p96 = scmp.ne.s32.totalorder %s87, %s88
      %p97 = scmp.eq.s32.totalorder %s21, 0
      %p98 = por %p96, %p97
      %p99 = scmp.ne.s32.totalorder %s87, %s88
      %p100 = scmp.eq.s32.totalorder %s22, 1
      %p101 = por %p99, %p100
      %p103 = scmp.ne.s32.totalorder %s88, %s102
      %p104 = scmp.eq.s32.totalorder %s22, 0
      %p105 = por %p103, %p104
      %s106 = ssub.s32 %s23, %s35
      %s107 = ssub.s32 %s24, %s31
      %s108 = sor.u32 %s106, %s107
      %p109 = scmp.eq.s32.totalorder %s108, 0
      %s111 = sadd.s32 %s110, 1
      %s112 = scalar_select %p109, %s110, %s111
      %p115 = pneg %p109
      %p116 = scmp.eq.s32.totalorder %s16, 1
      %p117 = por %p115, %p116
      %p118 = scmp.ne.s32.totalorder %s110, %s113
      %p119 = scmp.eq.s32.totalorder %s16, 0
      %p120 = por %p118, %p119
      %p121 = scmp.ne.s32.totalorder %s110, %s113
      %p122 = scmp.eq.s32.totalorder %s21, 1
      %p123 = por %p121, %p122
      %p124 = scmp.ne.s32.totalorder %s113, %s114
      %p125 = scmp.eq.s32.totalorder %s21, 0
      %p126 = por %p124, %p125
      %p127 = scmp.ne.s32.totalorder %s113, %s114
      %p128 = scmp.eq.s32.totalorder %s22, 1
      %p129 = por %p127, %p128
      %p131 = scmp.ne.s32.totalorder %s114, %s130
      %p132 = scmp.eq.s32.totalorder %s22, 0
      %p133 = por %p131, %p132
      %p134 = scmp.le.s32.totalorder 1, %s16
      %p135 = scmp.lt.s32.totalorder %s16, 3
      %p136 = pnand %p134, %p135
      %p137 = pneg %p136
      // Predicated region
      $region9: #{tpu_custom_call.1} parent=5 // pred_check
        _
      $region10: #{tpu_custom_call.1} parent=5 // pred_check_branch
        %139 = sbr.rel (%p136) target = $region12
      $region11: #{tpu_custom_call.1} parent=5 // pred_region
        %s140 = ssub.s32 %s16, 1
        // Predicated region
        $region13: #{tpu_custom_call.1} parent=11 // pred_check
          %p141 = pneg %p77
        $region14: #{tpu_custom_call.1} parent=11 // pred_check_branch
          %143 = sbr.rel (%p141) target = $region16
        $region15: #{tpu_custom_call.1} parent=11 // pred_region
          %145 = vsyncadd [#allocation6], 0
          %s147 = sshll.u32 %s1, 4
          %s148 = int_to_ptr.hbm [resolvable:$true] %s147
          %s149 = sshll.u32 [#allocation5], 4
          %s150 = int_to_ptr.vmem [resolvable:$true] %s149
          %152 = dma.hbm_to_vmem [thread:$0]  %s148, 64, %s150, [#allocation6]
        $region16: #{tpu_custom_call.1} parent=11 // pred_fallthru
          _
        // Predicated region
        $region17: #{tpu_custom_call.1} parent=11 // pred_check
          %p153 = pneg %p98
        $region18: #{tpu_custom_call.1} parent=11 // pred_check_branch
          %155 = sbr.rel (%p153) target = $region20
        $region19: #{tpu_custom_call.1} parent=11 // pred_region
          _
        $region20: #{tpu_custom_call.1} parent=11 // pred_fallthru
          _
      $region12: #{tpu_custom_call.1} parent=5 // pred_fallthru
        _
      %p156 = scmp.lt.s32.totalorder %s16, 2
      // Predicated region
      $region21: #{tpu_custom_call.1} parent=5 // pred_check
        %p157 = pneg %p156
      $region22: #{tpu_custom_call.1} parent=5 // pred_check_branch
        %159 = sbr.rel (%p157) target = $region24
      $region23: #{tpu_custom_call.1} parent=5 // pred_region
        // Predicated region
        $region25: #{tpu_custom_call.1} parent=23 // pred_check
          %p160 = pneg %p50
        $region26: #{tpu_custom_call.1} parent=23 // pred_check_branch
          %162 = sbr.rel (%p160) target = $region28
        $region27: #{tpu_custom_call.1} parent=23 // pred_region
          %s163 = sand.u32 %s40, 1
          %s164 = scalar_lea.sflag [#allocation3], %s163
          %s165 = sand.u32 %s40, 1
          %s166 = smul.addr %s165, 4
          %s167 = scalar_lea.vmem [#allocation2], %s166
          %169 = vsyncadd %s164, 0
          %s170 = sadd.s32 %s24, %s23
          %s171 = smul.addr %s170, 4
          %s172 = scalar_lea.hbm %s0, %s171
          %s174 = sshll.u32 %s172, 4
          %s175 = int_to_ptr.hbm [resolvable:$true] %s174
          %s176 = sshll.u32 %s167, 4
          %s177 = int_to_ptr.vmem [resolvable:$true] %s176
          %179 = dma.hbm_to_vmem [thread:$0]  %s175, 64, %s177, %s164
        $region28: #{tpu_custom_call.1} parent=23 // pred_fallthru
          _
      $region24: #{tpu_custom_call.1} parent=5 // pred_fallthru
        _
      %p180 = scmp.le.s32.totalorder 1, %s16
      %p181 = scmp.lt.s32.totalorder %s16, 3
      %p182 = pnand %p180, %p181
      %p183 = pneg %p182
      // Predicated region
      $region29: #{tpu_custom_call.1} parent=5 // pred_check
        _
      $region30: #{tpu_custom_call.1} parent=5 // pred_check_branch
        %185 = sbr.rel (%p182) target = $region32
      $region31: #{tpu_custom_call.1} parent=5 // pred_region
        %s186 = ssub.s32 %s16, 1
        %s187 = sand.u32 %s43, 1
        %s188 = scalar_lea.sflag [#allocation3], %s187
        %s189 = sand.u32 %s43, 1
        %s190 = smul.addr %s189, 4
        %s191 = scalar_lea.vmem [#allocation2], %s190
        // Predicated region
        $region33: #{tpu_custom_call.1} parent=31 // pred_check
          %p192 = pneg %p56
        $region34: #{tpu_custom_call.1} parent=31 // pred_check_branch
          %194 = sbr.rel (%p192) target = $region36
        $region35: #{tpu_custom_call.1} parent=31 // pred_region
          %196 = dma.done %s188, 64
        $region36: #{tpu_custom_call.1} parent=31 // pred_fallthru
          _
        // Predicated region
        $region37: #{tpu_custom_call.1} parent=31 // pred_check
          %p197 = pneg %p77
        $region38: #{tpu_custom_call.1} parent=31 // pred_check_branch
          %199 = sbr.rel (%p197) target = $region40
        $region39: #{tpu_custom_call.1} parent=31 // pred_region
          %201 = dma.done [#allocation6], 64
        $region40: #{tpu_custom_call.1} parent=31 // pred_fallthru
          _
        %s202 = sand.u32 %s43, 1
        %s203 = scalar_lea.sflag [#allocation3], %s202
        %s204 = sand.u32 %s43, 1
        %s205 = smul.addr %s204, 4
        %s206 = scalar_lea.vmem [#allocation2], %s205
        %p207 = pneg %p56
        %p208 = pneg %p53
        %p209 = pneg %p77
        %p210 = pneg %p74
        %p211 = pneg %p98
        %p212 = pneg %p95
        %p213 = pneg %p126
        %p214 = pneg %p123
        %s215 = sand.u32 %s113, 1
        %s216 = scalar_lea.sflag [#allocation4], %s215
        %s217 = sand.u32 %s113, 1
        %s218 = smul.addr %s217, 16
        %s219 = scalar_lea.vmem [#allocation7], %s218
        %s220 = smul.u32 2, %s26
        %v221 = vld [vmem:[%s191] sm:$0xf]
        %v222 = vld [vmem:[#allocation5] sm:$0xf]
        %v223 = vld [vmem:[%s2] sm:$0x1]
        %v225 = vperm.slane %v223, 0
        %227 = vxpose.xlu0.b32.start [1/16] %v221, 128
        %228 = vxpose.xlu0.b32.cont [2/16] 0.0, 128
        %229 = vxpose.xlu0.b32.cont [3/16] 0.0, 128
        %230 = vxpose.xlu0.b32.cont [4/16] 0.0, 128
        %231 = vxpose.xlu0.b32.cont [5/16] 0.0, 128
        %232 = vxpose.xlu0.b32.cont [6/16] 0.0, 128
        %233 = vxpose.xlu0.b32.cont [7/16] 0.0, 128
        %234 = vxpose.xlu0.b32.cont [8/16] 0.0, 128
        %235 = vxpose.xlu0.b32.cont [9/16] 0.0, 128
        %236 = vxpose.xlu0.b32.cont [10/16] 0.0, 128
        %237 = vxpose.xlu0.b32.cont [11/16] 0.0, 128
        %238 = vxpose.xlu0.b32.cont [12/16] 0.0, 128
        %239 = vxpose.xlu0.b32.cont [13/16] 0.0, 128
        %240 = vxpose.xlu0.b32.cont [14/16] 0.0, 128
        %241 = vxpose.xlu0.b32.cont [15/16] 0.0, 128
        %242 = vxpose.xlu0.b32.end [16/16] 0.0, 128
        %v243 = vpop.trf.xlu0
        %v244 = vpop.trf.xlu0
        %v245 = vpop.trf.xlu0
        %v246 = vpop.trf.xlu0
        %v247 = vpop.trf.xlu0
        %v248 = vpop.trf.xlu0
        %v249 = vpop.trf.xlu0
        %v250 = vpop.trf.xlu0
        %v251 = vpop.trf.xlu0
        %v252 = vpop.trf.xlu0
        %v253 = vpop.trf.xlu0
        %v254 = vpop.trf.xlu0
        %v255 = vpop.trf.xlu0
        %v256 = vpop.trf.xlu0
        %v257 = vpop.trf.xlu0
        %v258 = vpop.trf.xlu0
        %vm259 = vcmask 31744
        %v261 = vsel %vm259, %v243, 0
        %v264 = vsel %vm259, %v244, 0
        %vm266 = vcmask 1043456
        %v268 = vsel %vm266, %v222, 0
        %270 = vmatpush.msra.mxu0 0.0
        %271 = vmatpush.msra.mxu0 0.0
        %272 = vmatpush.msra.mxu0 0.0
        %273 = vmatpush.msra.mxu0 0.0
        %274 = vmatpush.msra.mxu0 0.0
        %275 = vmatpush.msra.mxu0 0.0
        %276 = vmatpush.msra.mxu0 0.0
        %277 = vmatpush.msra.mxu0 0.0
        %278 = vmatpush.msra.mxu0 0.0
        %279 = vmatpush.msra.mxu0 0.0
        %280 = vmatpush.msra.mxu0 0.0
        %281 = vmatpush.msra.mxu0 0.0
        %282 = vmatpush.msra.mxu0 0.0
        %283 = vmatpush.msra.mxu0 0.0
        %284 = vmatpush.msra.mxu0 0.0
        %285 = vmatpush.msra.mxu0 %v268
        %286 = vmatmul.f32.gmra.mxu0 %v261
        %v287 = vpop.f32.mrf.mxu0
        %v288 = vadd.f32 %v225, %v287
        %289 = vmatmul.f32.gmra.mxu0 %v264
        %v290 = vpop.f32.mrf.mxu0
        %v291 = vadd.f32 %v225, %v290
        %292 = vdwg.mxu0
        %293 = vst [vmem:[%s219] sm:$0xff] %v288
        %294 = vst [vmem:[%s219 + $0x8] sm:$0xff] %v291
        %s295 = sand.u32 %s113, 1
        %s296 = scalar_lea.sflag [#allocation4], %s295
        %s297 = sand.u32 %s113, 1
        %s298 = smul.addr %s297, 16
        %s299 = scalar_lea.vmem [#allocation7], %s298
        // Predicated region
        $region41: #{tpu_custom_call.1} parent=31 // pred_check
          %p300 = pneg %p123
        $region42: #{tpu_custom_call.1} parent=31 // pred_check_branch
          %302 = sbr.rel (%p300) target = $region44
        $region43: #{tpu_custom_call.1} parent=31 // pred_region
          %s303 = smul.u32 2, %s26
          %305 = vsyncadd %s296, 0
          %s306 = smul.addr %s25, 2
          %s307 = sadd.s32 %s303, %s306
          %s308 = smul.addr %s307, 8
          %s309 = scalar_lea.hbm %s3, %s308
          %s310 = sshll.u32 %s299, 4
          %s311 = int_to_ptr.vmem [resolvable:$true] %s310
          %s312 = sshll.u32 %s309, 4
          %s313 = int_to_ptr.hbm [resolvable:$true] %s312
          %318 = dma.vmem_to_hbm [thread:$0]  %s311, 256, %s313, %s296, 128, 128, 8
        $region44: #{tpu_custom_call.1} parent=31 // pred_fallthru
          _
      $region32: #{tpu_custom_call.1} parent=5 // pred_fallthru
        _
      %p319 = scmp.le.s32.totalorder 2, %s16
      // Predicated region
      $region45: #{tpu_custom_call.1} parent=5 // pred_check
        %p320 = pneg %p319
      $region46: #{tpu_custom_call.1} parent=5 // pred_check_branch
        %322 = sbr.rel (%p320) target = $region48
      $region47: #{tpu_custom_call.1} parent=5 // pred_region
        %s323 = ssub.s32 %s16, 2
        // Predicated region
        $region49: #{tpu_custom_call.1} parent=47 // pred_check
          %p324 = pneg %p129
        $region50: #{tpu_custom_call.1} parent=47 // pred_check_branch
          %326 = sbr.rel (%p324) target = $region52
        $region51: #{tpu_custom_call.1} parent=47 // pred_region
          %s327 = sand.u32 %s114, 1
          %s328 = scalar_lea.sflag [#allocation4], %s327
          %s329 = sand.u32 %s114, 1
          %s330 = smul.addr %s329, 16
          %s331 = scalar_lea.vmem [#allocation7], %s330
          %333 = dma.done %s328, 256
        $region52: #{tpu_custom_call.1} parent=47 // pred_fallthru
          _
      $region48: #{tpu_custom_call.1} parent=5 // pred_fallthru
        _
    $region6: #{tpu_custom_call.1} parent=1 // loop_footer
      %s20 = sadd.s32 1, %s16
    $region7: #{tpu_custom_call.1} parent=1 // loop_footer_branch
      %15 = sbr.rel target = $region3
    $region8: #{tpu_custom_call.1} parent=1 // loop_exit
      _
    %334 = vsyncpa [#allocation3], 1
    %s335 = scalar_lea.sflag [#allocation3], 1
    %336 = vsyncpa %s335, 1
    %337 = vsyncpa [#allocation6], 1
    %338 = vsyncpa [#allocation4], 1
    %s339 = scalar_lea.sflag [#allocation4], 1
    %340 = vsyncpa %s339, 1

</llo_original>
